<compile_context>
chip_gen: v7x
topology: tpu7x:2x2x1
jax: 0.10.0
libtpu: 0.0.40
codegen_flags: <defaults>
</compile_context>

<pallas_src>
import jax
import jax.numpy as jnp
from jax.experimental import pallas as pl
from jax.experimental.pallas import tpu as pltpu


def _round_up(v, m):
    return ((v + m - 1) // m) * m


def _choose_tiles(n, tile_n, tile_k):
    """Pick tile sizes: tile_k multiple of 128, tile_n multiple of 32 (int8 packing),
    with >=2 row tiles whenever the graph allows it (megacore load balance)."""
    tile_k = min(tile_k, _round_up(n, 128))
    tile_k = _round_up(tile_k, 128)
    half = max(32, _round_up(pl.cdiv(n, 2), 32))
    tile_n = min(tile_n, half)
    tile_n = _round_up(tile_n, 32)
    return tile_n, tile_k


def _make_kernel(tile_k, resident_xw):
    def kernel(a_ref, xw_ref, root_ref, dl_ref, o_ref):
        k = pl.program_id(1)

        @pl.when(k == 0)
        def _():
            o_ref[...] = jnp.zeros_like(o_ref)

        # int8 0/1 adjacency tile -> bf16 (VPU upcast, hidden under the DMA).
        a = a_ref[...].astype(jnp.bfloat16)
        if resident_xw:
            # XW lives fully in VMEM; slice the current K window (aligned).
            start = pl.multiple_of(k * tile_k, tile_k)
            xw = xw_ref[pl.ds(start, tile_k), :]
        else:
            xw = xw_ref[...]

        # bf16 x bf16 -> f32 accumulation on the MXU, directly into the
        # VMEM-resident f32 output block (no scratch accumulator).
        o_ref[...] += jnp.dot(a, xw, preferred_element_type=jnp.float32)

        @pl.when(k == pl.num_programs(1) - 1)
        def _():
            # f32 epilogue: left D^{-1/2} scaling, skip/root term (+bias), ReLU.
            # (inner ARMAConv ReLU + ARMA1's outer F.relu are idempotent.)
            o_ref[...] = jnp.maximum(dl_ref[...] * o_ref[...] + root_ref[...], 0.0)

    return kernel


def prepare_graph(adj, *, tile_n=512, tile_k=2048):
    """One-time, graph-dependent preprocessing (reuse across forward calls).

    adj: [N, N] dense 0/1 adjacency, no self loops (f32 or any numeric dtype).
    """
    n = adj.shape[0]
    tile_n, tile_k = _choose_tiles(n, tile_n, tile_k)
    # Even row-tile count so the "parallel" axis splits evenly over 2 TCs (v7x).
    n_r = _round_up(n, 2 * tile_n)
    n_c = _round_up(n, tile_k)

    deg = adj.sum(axis=1).astype(jnp.float32)
    d_inv_sqrt = jnp.where(deg > 0.0, 1.0 / jnp.sqrt(deg), 0.0).astype(jnp.float32)

    a_p = jnp.zeros((n_r, n_c), jnp.int8).at[:n, :n].set(adj.astype(jnp.int8))
    dl_p = jnp.zeros((n_r, 1), jnp.float32).at[:n, 0].set(d_inv_sqrt)

    return {
        "N": n, "tile_n": tile_n, "tile_k": tile_k, "N_r": n_r, "N_c": n_c,
        "a_p": a_p, "dl_p": dl_p, "d_inv_sqrt": d_inv_sqrt,
    }


def arma1_forward(x, graph, w_init, w_root, bias):
    """ARMA1 forward.

    x:      [N, F_in] f32 node features
    graph:  dict from prepare_graph(adj), or a raw [N, N] dense adjacency
    w_init: [F_in, F_out], w_root: [F_in, F_out], bias: [1, F_out]
    """
    if not isinstance(graph, dict):
        graph = prepare_graph(graph)

    n = graph["N"]
    tile_n, tile_k = graph["tile_n"], graph["tile_k"]
    n_r, n_c = graph["N_r"], graph["N_c"]
    a_p, dl_p, d_inv_sqrt = graph["a_p"], graph["dl_p"], graph["d_inv_sqrt"]

    f_out = w_init.shape[1]
    f_pad = max(_round_up(f_out, 128), 128)          # lane-dense output; do NOT widen further

    # --- per-call glue (plain XLA, cheap N*F work): hoisted matmuls ---
    xw = (d_inv_sqrt[:, None] * (x @ w_init)).astype(jnp.bfloat16)   # fold RIGHT D^{-1/2}
    root = (x @ w_root + bias).astype(jnp.float32)                   # skip term + bias

    xw_p = jnp.zeros((n_c, f_pad), jnp.bfloat16).at[:n, :f_out].set(xw)
    root_p = jnp.zeros((n_r, f_pad), jnp.float32).at[:n, :f_out].set(root)

    # --- XW residency decision: keep the whole slab in VMEM unless it is huge ---
    # (budget double-buffered slab against ~24 MiB so the total stays well
    #  under v7x's 64 MiB physical / the 48 MiB limit below)
    resident_xw = (2 * n_c * f_pad * 2) <= (24 << 20)

    grid = (n_r // tile_n, n_c // tile_k)

    if resident_xw:
        xw_spec = pl.BlockSpec((n_c, f_pad), lambda i, k: (0, 0))
    else:
        xw_spec = pl.BlockSpec((tile_k, f_pad), lambda i, k: (k, 0))

    out_p = pl.pallas_call(
        _make_kernel(tile_k, resident_xw),
        out_shape=jax.ShapeDtypeStruct((n_r, f_pad), jnp.float32),
        grid_spec=pltpu.PrefetchScalarGridSpec(
            num_scalar_prefetch=0,
            grid=grid,
            in_specs=[
                pl.BlockSpec((tile_n, tile_k), lambda i, k: (i, k)),   # A tile (int8)
                xw_spec,                                               # XW (bf16)
                pl.BlockSpec((tile_n, f_pad), lambda i, k: (i, 0)),    # root tile (f32)
                pl.BlockSpec((tile_n, 1), lambda i, k: (i, 0)),        # d_inv_sqrt rows (f32)
            ],
            out_specs=pl.BlockSpec((tile_n, f_pad), lambda i, k: (i, 0)),
        ),
        compiler_params=pltpu.CompilerParams(
            dimension_semantics=("parallel", "arbitrary"),
            vmem_limit_bytes=48 * 1024 * 1024,   # safe on v7x (64 MiB phys), fine on v5e/v6e
        ),
    )(a_p, xw_p, root_p, dl_p)

    return out_p[:n, :f_out]


if __name__ == "__main__":
    # Small shapes consistent with the module: N nodes (deliberately NOT a
    # multiple of 128 to exercise the padding path), nfeat in, nclass out.
    N, nfeat, nclass = 200, 32, 8
    key = jax.random.PRNGKey(0)
    kx, ka, kwi, kwr = jax.random.split(key, 4)

    # Node features.
    x = jax.random.normal(kx, (N, nfeat), dtype=jnp.float32)

    # Random symmetric 0/1 adjacency, no self loops.
    a = (jax.random.uniform(ka, (N, N)) < 0.05).astype(jnp.float32)
    a = jnp.maximum(a, a.T)
    a = a * (1.0 - jnp.eye(N, dtype=jnp.float32))

    # Deterministic glorot-style init; PyG ARMAConv shapes collapse to:
    #   init_weight -> (nfeat, nclass), root_weight -> (nfeat, nclass),
    #   bias -> (1, nclass) zero-init.  Dropout is inference-identity.
    scale = (6.0 / (nfeat + nclass)) ** 0.5
    w_init = jax.random.uniform(kwi, (nfeat, nclass), jnp.float32, -scale, scale)
    w_root = jax.random.uniform(kwr, (nfeat, nclass), jnp.float32, -scale, scale)
    bias = jnp.zeros((1, nclass), dtype=jnp.float32)

    # Graph-dependent prep is done once and reused (the expensive N^2 pad/cast).
    graph = prepare_graph(a)

    out = arma1_forward(x, graph, w_init, w_root, bias)
    out = jax.block_until_ready(out)

    # Pure-JAX f32 reference of the same math (bf16 XW stream -> loose tol).
    deg = a.sum(axis=1)
    dis = jnp.where(deg > 0, 1.0 / jnp.sqrt(deg), 0.0)
    a_norm = dis[:, None] * a * dis[None, :]
    ref = jnp.maximum(a_norm @ (x @ w_init) + x @ w_root + bias, 0.0)
    assert out.shape == (N, nclass)
    assert jnp.allclose(out, ref, atol=3e-2, rtol=3e-2), float(jnp.max(jnp.abs(out - ref)))

    print("KERNEL_OK")
</pallas_src>

<mosaic_0001>
module attributes {stable_mosaic.version = 11 : i64} {
  func.func @kernel(%arg0: i32, %arg1: i32, %arg2: memref<128x256xi8, #tpu.memory_space<vmem>>, %arg3: memref<256x128xbf16, #tpu.memory_space<vmem>>, %arg4: memref<128x128xf32, #tpu.memory_space<vmem>>, %arg5: memref<128x1xf32, #tpu.memory_space<vmem>>, %arg6: memref<128x128xf32, #tpu.memory_space<vmem>>) attributes {dimension_semantics = [#tpu.dimension_semantics<parallel>, #tpu.dimension_semantics<arbitrary>], iteration_bounds = array<i64: 2, 1>, scalar_prefetch = 0 : i64, scratch_operands = 0 : i64, tpu.core_type = #tpu.core_type<tc>, window_params = [{transform_indices = @transform_0, window_bounds = array<i64: 128, 256>}, {pipeline_mode = #tpu.pipeline_mode<synchronous>, transform_indices = @transform_1, window_bounds = array<i64: 256, 128>}, {transform_indices = @transform_2, window_bounds = array<i64: 128, 128>}, {transform_indices = @transform_3, window_bounds = array<i64: 128, 1>}, {transform_indices = @transform_4, window_bounds = array<i64: 128, 128>}]} {
    %c0_i32 = arith.constant 0 : i32
    %0 = arith.cmpi eq, %arg1, %c0_i32 : i32
    %1 = arith.extui %0 : i1 to i32
    %c0_i32_0 = arith.constant 0 : i32
    %2 = arith.cmpi ne, %1, %c0_i32_0 : i32
    scf.if %2 {
      %cst_9 = arith.constant 0.000000e+00 : f32
      %16 = vector.broadcast %cst_9 : f32 to vector<128x128xf32>
      %c0_10 = arith.constant 0 : index
      %c0_11 = arith.constant 0 : index
      %17 = vector.load %arg6[%c0_10, %c0_11] : memref<128x128xf32, #tpu.memory_space<vmem>>, vector<128x128xf32>
      tpu.vector_store %arg6[%c0_10, %c0_11], %16 {strides = array<i32>} : memref<128x128xf32, #tpu.memory_space<vmem>>, vector<128x128xf32>,
    } else {
    }
    %c0 = arith.constant 0 : index
    %c0_1 = arith.constant 0 : index
    %3 = vector.load %arg2[%c0, %c0_1] : memref<128x256xi8, #tpu.memory_space<vmem>>, vector<128x256xi8>
    %4 = arith.sitofp %3 : vector<128x256xi8> to vector<128x256xbf16>
    %c256_i32 = arith.constant 256 : i32
    %5 = arith.muli %arg1, %c256_i32 : i32
    %6 = tpu.assume_multiple %5, 256 : i32
    %7 = arith.index_cast %6 : i32 to index
    %c0_2 = arith.constant 0 : index
    %8 = vector.load %arg3[%7, %c0_2] : memref<256x128xbf16, #tpu.memory_space<vmem>>, vector<256x128xbf16>
    %c0_3 = arith.constant 0 : index
    %c0_4 = arith.constant 0 : index
    %9 = vector.load %arg6[%c0_3, %c0_4] : memref<128x128xf32, #tpu.memory_space<vmem>>, vector<128x128xf32>
    %cst = arith.constant dense<0.000000e+00> : vector<128x128xf32>
    %10 = tpu.matmul %4, %8, %cst {dimension_numbers = #tpu.dot_dimension_numbers<[1], [0], [0], [1], [0, 0, 1, 1], [], []>} : vector<128x256xbf16>, vector<256x128xbf16>, vector<128x128xf32> -> vector<128x128xf32>
    %11 = arith.addf %9, %10 : vector<128x128xf32>
    %c0_5 = arith.constant 0 : index
    %c0_6 = arith.constant 0 : index
    %12 = vector.load %arg6[%c0_5, %c0_6] : memref<128x128xf32, #tpu.memory_space<vmem>>, vector<128x128xf32>
    tpu.vector_store %arg6[%c0_5, %c0_6], %11 {strides = array<i32>} : memref<128x128xf32, #tpu.memory_space<vmem>>, vector<128x128xf32>,
    %c0_i32_7 = arith.constant 0 : i32
    %13 = arith.cmpi eq, %arg1, %c0_i32_7 : i32
    %14 = arith.extui %13 : i1 to i32
    %c0_i32_8 = arith.constant 0 : i32
    %15 = arith.cmpi ne, %14, %c0_i32_8 : i32
    scf.if %15 {
      %c0_9 = arith.constant 0 : index
      %c0_10 = arith.constant 0 : index
      %16 = vector.load %arg5[%c0_9, %c0_10] : memref<128x1xf32, #tpu.memory_space<vmem>>, vector<128x1xf32>
      %c0_11 = arith.constant 0 : index
      %c0_12 = arith.constant 0 : index
      %17 = vector.load %arg6[%c0_11, %c0_12] : memref<128x128xf32, #tpu.memory_space<vmem>>, vector<128x128xf32>
      %18 = vector.broadcast %16 : vector<128x1xf32> to vector<128x128xf32>
      %19 = arith.mulf %18, %17 : vector<128x128xf32>
      %c0_13 = arith.constant 0 : index
      %c0_14 = arith.constant 0 : index
      %20 = vector.load %arg4[%c0_13, %c0_14] : memref<128x128xf32, #tpu.memory_space<vmem>>, vector<128x128xf32>
      %21 = arith.addf %19, %20 : vector<128x128xf32>
      %cst_15 = arith.constant 0.000000e+00 : f32
      %22 = vector.broadcast %cst_15 : f32 to vector<128x128xf32>
      %23 = arith.maximumf %21, %22 : vector<128x128xf32>
      %c0_16 = arith.constant 0 : index
      %c0_17 = arith.constant 0 : index
      %24 = vector.load %arg6[%c0_16, %c0_17] : memref<128x128xf32, #tpu.memory_space<vmem>>, vector<128x128xf32>
      tpu.vector_store %arg6[%c0_16, %c0_17], %23 {strides = array<i32>} : memref<128x128xf32, #tpu.memory_space<vmem>>, vector<128x128xf32>,
    } else {
    }
    return
  }
  func.func @transform_0(%arg0: i32, %arg1: i32) -> (i32, i32) {
    %c0_i32 = arith.constant 0 : i32
    return %arg0, %arg1 : i32, i32
  }
  func.func @transform_1(%arg0: i32, %arg1: i32) -> (i32, i32) {
    %c0_i32 = arith.constant 0 : i32
    %c0_i32_0 = arith.constant 0 : i32
    %c0_i32_1 = arith.constant 0 : i32
    return %c0_i32, %c0_i32_0 : i32, i32
  }
  func.func @transform_2(%arg0: i32, %arg1: i32) -> (i32, i32) {
    %c0_i32 = arith.constant 0 : i32
    %c0_i32_0 = arith.constant 0 : i32
    return %arg0, %c0_i32 : i32, i32
  }
  func.func @transform_3(%arg0: i32, %arg1: i32) -> (i32, i32) {
    %c0_i32 = arith.constant 0 : i32
    %c0_i32_0 = arith.constant 0 : i32
    return %arg0, %c0_i32 : i32, i32
  }
  func.func @transform_4(%arg0: i32, %arg1: i32) -> (i32, i32) {
    %c0_i32 = arith.constant 0 : i32
    %c0_i32_0 = arith.constant 0 : i32
    return %arg0, %c0_i32 : i32, i32
  }
}

</mosaic_0001>

<llo_original>
// kernel: tpu_custom_call.1
$region0: #{tpu_custom_call.1}
  #allocation0 [shape = 'u32[]', space=smem, size = 0x4, offset = 0x4, fixed_abs, tag = 'smem constant byte address 0x4 - core index']
  #allocation1 [shape = 'u32[144,128]{1,0:T(1,128)}', space=vmem, size = 0x12000, scoped, tag = 'internal scratch']
  %s0 = inlined_call_operand.hbm [shape: s8[256,256], index: 0, kind: input, shape index: {}]
  %s1 = inlined_call_operand.hbm [shape: bf16[256,128], index: 1, kind: input, shape index: {}]
  %s2 = inlined_call_operand.vmem [shape: f32[256,128], index: 2, kind: input, shape index: {}]
  %s3 = inlined_call_operand.vmem [shape: f32[256,1], index: 3, kind: input, shape index: {}]
  %s4 = inlined_call_operand.hbm [shape: f32[256,128], index: 4, kind: output, shape index: {}]
  %s5 = sld [smem:[#allocation0]]
  $region65: #{tpu_custom_call.1} parent=0
    _
  %s7 = ssub.s32 1, %s5
  %s8 = scalar_select 0, %s7, %s5
  $region1: #{tpu_custom_call.1} parent=0
    #allocation2 [shape = 'u8[65536]{0}', space=vmem, size = 0x10000, scoped, tag = 'input window, operand 0']
    #allocation3 [shape = 's32[2]{0}', space=sflag, size = 0x8, scoped, tag = 'scoped memory for tpu_custom_call.1']
    #allocation4 [shape = 's32[2]{0}', space=sflag, size = 0x8, scoped, tag = 'scoped memory for tpu_custom_call.1']
    #allocation5 [shape = 'u8[65536]{0}', space=vmem, size = 0x10000, scoped, tag = 'input window, operand 1, single buffered']
    #allocation6 [shape = 's32[1]{0}', space=sflag, size = 0x4, scoped, tag = 'scoped memory for tpu_custom_call.1']
    #allocation7 [shape = 'u8[131072]{0}', space=vmem, size = 0x20000, scoped, tag = 'output window, operand 0']
    %9 = vsyncpa [#allocation3], 0
    %s10 = scalar_lea.sflag [#allocation3], 1
    %11 = vsyncpa %s10, 0
    %12 = vsyncpa [#allocation6], 0
    %13 = vsyncpa [#allocation4], 0
    %s14 = scalar_lea.sflag [#allocation4], 1
    %15 = vsyncpa %s14, 0
    loop: start=0, step=1, limit=4
    $region2: #{tpu_custom_call.1} parent=1 // loop_pre_header
      _
    $region3: #{tpu_custom_call.1} parent=1 // loop_header
      %s17 = sphi 0, %s21
      %p18 = scmp.ge.s32.totalorder %s17, 4
      %s24 = sphi 0, %s36
      %s25 = sphi 0, %s32
      %s26 = sphi 0, %s24
      %s27 = sphi 0, %s25
      %s28 = sphi 0, %s26
      %s29 = sphi 0, %s27
      %s41 = sphi 0, %s43
      %s44 = sphi 0, %s41
      %s45 = sphi 0, %s44
      %s61 = sphi 0, %s45
      %s65 = sphi 0, %s65
      %s67 = sphi 0, %s65
      %s68 = sphi 0, %s67
      %s82 = sphi 0, %s68
      %s88 = sphi 0, %s90
      %s91 = sphi 0, %s88
      %s92 = sphi 0, %s91
      %s108 = sphi 0, %s92
      %s114 = sphi 0, %s116
      %s117 = sphi 0, %s114
      %s118 = sphi 0, %s117
      %s134 = sphi 0, %s118
      %s140 = sphi 0, %s142
      %s143 = sphi 0, %s140
      %s144 = sphi 0, %s143
      %s160 = sphi 0, %s144
    $region4: #{tpu_custom_call.1} parent=1 // loop_header_branch
      %20 = sbr.rel (%p18) target = $region8
    $region5: #{tpu_custom_call.1} parent=1 // loop_body
      %s22 = ssub.s32 %s17, 1
      %s23 = ssub.s32 %s17, 2
      %s30 = sadd.s32 1, %s25
      %p31 = scmp.ge.s32.totalorder %s30, 1
      %s32 = scalar_select %p31, 0, %s30
      %s33 = sadd.s32 1, %s24
      %s34 = scalar_select %p31, %s33, %s24
      %p35 = scmp.ge.s32.totalorder %s34, 2
      %s36 = scalar_select %p35, 0, %s34
      %s37 = ssub.s32 %s24, %s36
      %s38 = ssub.s32 %s25, %s32
      %s39 = sor.u32 %s37, %s38
      %p40 = scmp.eq.s32.totalorder %s39, 0
      %s42 = sadd.s32 %s41, 1
      %s43 = scalar_select %p40, %s41, %s42
      %p46 = pneg %p40
      %p47 = scmp.eq.s32.totalorder %s17, 1
      %p48 = por %p46, %p47
      %p49 = scmp.ne.s32.totalorder %s41, %s44
      %p50 = scmp.eq.s32.totalorder %s17, 0
      %p51 = por %p49, %p50
      %p52 = scmp.ne.s32.totalorder %s41, %s44
      %p53 = scmp.eq.s32.totalorder %s22, 1
      %p54 = por %p52, %p53
      %p55 = scmp.ne.s32.totalorder %s44, %s45
      %p56 = scmp.eq.s32.totalorder %s22, 0
      %p57 = por %p55, %p56
      %p58 = scmp.ne.s32.totalorder %s44, %s45
      %p59 = scmp.eq.s32.totalorder %s23, 1
      %p60 = por %p58, %p59
      %p62 = scmp.ne.s32.totalorder %s45, %s61
      %p63 = scmp.eq.s32.totalorder %s23, 0
      %p64 = por %p62, %p63
      %s66 = sadd.s32 %s65, 1
      %p69 = scmp.eq.s32.totalorder %s17, 1
      %p70 = scmp.ne.s32.totalorder %s65, %s67
      %p71 = scmp.eq.s32.totalorder %s17, 0
      %p72 = por %p70, %p71
      %p73 = scmp.ne.s32.totalorder %s65, %s67
      %p74 = scmp.eq.s32.totalorder %s22, 1
      %p75 = por %p73, %p74
      %p76 = scmp.ne.s32.totalorder %s67, %s68
      %p77 = scmp.eq.s32.totalorder %s22, 0
      %p78 = por %p76, %p77
      %p79 = scmp.ne.s32.totalorder %s67, %s68
      %p80 = scmp.eq.s32.totalorder %s23, 1
      %p81 = por %p79, %p80
      %p83 = scmp.ne.s32.totalorder %s68, %s82
      %p84 = scmp.eq.s32.totalorder %s23, 0
      %p85 = por %p83, %p84
      %s86 = ssub.s32 %s24, %s36
      %p87 = scmp.eq.s32.totalorder %s86, 0
      %s89 = sadd.s32 %s88, 1
      %s90 = scalar_select %p87, %s88, %s89
      %p93 = pneg %p87
      %p94 = scmp.eq.s32.totalorder %s17, 1
      %p95 = por %p93, %p94
      %p96 = scmp.ne.s32.totalorder %s88, %s91
      %p97 = scmp.eq.s32.totalorder %s17, 0
      %p98 = por %p96, %p97
      %p99 = scmp.ne.s32.totalorder %s88, %s91
      %p100 = scmp.eq.s32.totalorder %s22, 1
      %p101 = por %p99, %p100
      %p102 = scmp.ne.s32.totalorder %s91, %s92
      %p103 = scmp.eq.s32.totalorder %s22, 0
      %p104 = por %p102, %p103
      %p105 = scmp.ne.s32.totalorder %s91, %s92
      %p106 = scmp.eq.s32.totalorder %s23, 1
      %p107 = por %p105, %p106
      %p109 = scmp.ne.s32.totalorder %s92, %s108
      %p110 = scmp.eq.s32.totalorder %s23, 0
      %p111 = por %p109, %p110
      %s112 = ssub.s32 %s24, %s36
      %p113 = scmp.eq.s32.totalorder %s112, 0
      %s115 = sadd.s32 %s114, 1
      %s116 = scalar_select %p113, %s114, %s115
      %p119 = pneg %p113
      %p120 = scmp.eq.s32.totalorder %s17, 1
      %p121 = por %p119, %p120
      %p122 = scmp.ne.s32.totalorder %s114, %s117
      %p123 = scmp.eq.s32.totalorder %s17, 0
      %p124 = por %p122, %p123
      %p125 = scmp.ne.s32.totalorder %s114, %s117
      %p126 = scmp.eq.s32.totalorder %s22, 1
      %p127 = por %p125, %p126
      %p128 = scmp.ne.s32.totalorder %s117, %s118
      %p129 = scmp.eq.s32.totalorder %s22, 0
      %p130 = por %p128, %p129
      %p131 = scmp.ne.s32.totalorder %s117, %s118
      %p132 = scmp.eq.s32.totalorder %s23, 1
      %p133 = por %p131, %p132
      %p135 = scmp.ne.s32.totalorder %s118, %s134
      %p136 = scmp.eq.s32.totalorder %s23, 0
      %p137 = por %p135, %p136
      %s138 = ssub.s32 %s24, %s36
      %p139 = scmp.eq.s32.totalorder %s138, 0
      %s141 = sadd.s32 %s140, 1
      %s142 = scalar_select %p139, %s140, %s141
      %p145 = pneg %p139
      %p146 = scmp.eq.s32.totalorder %s17, 1
      %p147 = por %p145, %p146
      %p148 = scmp.ne.s32.totalorder %s140, %s143
      %p149 = scmp.eq.s32.totalorder %s17, 0
      %p150 = por %p148, %p149
      %p151 = scmp.ne.s32.totalorder %s140, %s143
      %p152 = scmp.eq.s32.totalorder %s22, 1
      %p153 = por %p151, %p152
      %p154 = scmp.ne.s32.totalorder %s143, %s144
      %p155 = scmp.eq.s32.totalorder %s22, 0
      %p156 = por %p154, %p155
      %p157 = scmp.ne.s32.totalorder %s143, %s144
      %p158 = scmp.eq.s32.totalorder %s23, 1
      %p159 = por %p157, %p158
      %p161 = scmp.ne.s32.totalorder %s144, %s160
      %p162 = scmp.eq.s32.totalorder %s23, 0
      %p163 = por %p161, %p162
      %p164 = scmp.le.s32.totalorder 1, %s17
      %p165 = scmp.lt.s32.totalorder %s17, 3
      %p166 = pnand %p164, %p165
      %p167 = pneg %p166
      // Predicated region
      $region9: #{tpu_custom_call.1} parent=5 // pred_check
        _
      $region10: #{tpu_custom_call.1} parent=5 // pred_check_branch
        %169 = sbr.rel (%p166) target = $region12
      $region11: #{tpu_custom_call.1} parent=5 // pred_region
        %s170 = ssub.s32 %s17, 1
        // Predicated region
        $region13: #{tpu_custom_call.1} parent=11 // pred_check
          %p171 = pneg %p78
        $region14: #{tpu_custom_call.1} parent=11 // pred_check_branch
          %173 = sbr.rel (%p171) target = $region16
        $region15: #{tpu_custom_call.1} parent=11 // pred_region
          %s175 = ssub.s32 2048, 2048
          %176 = vsyncadd [#allocation6], %s175
          %s177 = sshll.u32 [#allocation5], 4
          %s178 = int_to_ptr.vmem [resolvable:$true] %s177
          %183 = dma.hbm_to_vmem [thread:$0]  %s1, 2048, %s178, [#allocation6], 64, 64, 4
        $region16: #{tpu_custom_call.1} parent=11 // pred_fallthru
          _
      $region12: #{tpu_custom_call.1} parent=5 // pred_fallthru
        _
      %p184 = scmp.lt.s32.totalorder %s17, 2
      // Predicated region
      $region17: #{tpu_custom_call.1} parent=5 // pred_check
        %p185 = pneg %p184
      $region18: #{tpu_custom_call.1} parent=5 // pred_check_branch
        %187 = sbr.rel (%p185) target = $region20
      $region19: #{tpu_custom_call.1} parent=5 // pred_region
        // Predicated region
        $region21: #{tpu_custom_call.1} parent=19 // pred_check
          %p188 = pneg %p51
        $region22: #{tpu_custom_call.1} parent=19 // pred_check_branch
          %190 = sbr.rel (%p188) target = $region24
        $region23: #{tpu_custom_call.1} parent=19 // pred_region
          %s191 = sand.u32 %s41, 1
          %s192 = scalar_lea.sflag [#allocation3], %s191
          %s193 = sand.u32 %s41, 1
          %s194 = smul.addr %s193, 64
          %s195 = scalar_lea.vmem [#allocation2], %s194
          %s196 = smul.u32 4, %s24
          %s197 = smul.u32 2, %s25
          %s199 = ssub.s32 1024, 1024
          %200 = vsyncadd %s192, %s199
          %s201 = smul.addr %s196, 2
          %s202 = sadd.s32 %s197, %s201
          %s203 = smul.addr %s202, 128
          %s204 = scalar_lea.hbm %s0, %s203
          %s205 = sshll.u32 %s195, 4
          %s206 = int_to_ptr.vmem [resolvable:$true] %s205
          %211 = dma.hbm_to_vmem [thread:$0]  %s204, 1024, %s206, %s192, 256, 256, 16
        $region24: #{tpu_custom_call.1} parent=19 // pred_fallthru
          _
        // Predicated region
        $region25: #{tpu_custom_call.1} parent=19 // pred_check
          %p212 = pneg %p98
        $region26: #{tpu_custom_call.1} parent=19 // pred_check_branch
          %214 = sbr.rel (%p212) target = $region28
        $region27: #{tpu_custom_call.1} parent=19 // pred_region
          %s215 = smul.u32 16, %s24
          %p216 = scmp.lt.s32.totalorder %s215, 31
          %s217 = scalar_select %p216, %s215, 31
          %s218 = smul.addr %s217, 8
          %s219 = scalar_lea.vmem %s2, %s218
          %s220 = smul.u32 16, %s24
        $region28: #{tpu_custom_call.1} parent=19 // pred_fallthru
          _
        // Predicated region
        $region29: #{tpu_custom_call.1} parent=19 // pred_check
          %p221 = pneg %p124
        $region30: #{tpu_custom_call.1} parent=19 // pred_check_branch
          %223 = sbr.rel (%p221) target = $region32
        $region31: #{tpu_custom_call.1} parent=19 // pred_region
          %s224 = smul.u32 16, %s24
          %p225 = scmp.lt.s32.totalorder %s224, 31
          %s226 = scalar_select %p225, %s224, 31
          %s227 = smul.addr %s226, 8
          %s228 = scalar_lea.vmem %s3, %s227
          %s229 = smul.u32 16, %s24
        $region32: #{tpu_custom_call.1} parent=19 // pred_fallthru
          _
      $region20: #{tpu_custom_call.1} parent=5 // pred_fallthru
        _
      %p230 = scmp.le.s32.totalorder 1, %s17
      %p231 = scmp.lt.s32.totalorder %s17, 3
      %p232 = pnand %p230, %p231
      %p233 = pneg %p232
      // Predicated region
      $region33: #{tpu_custom_call.1} parent=5 // pred_check
        _
      $region34: #{tpu_custom_call.1} parent=5 // pred_check_branch
        %235 = sbr.rel (%p232) target = $region36
      $region35: #{tpu_custom_call.1} parent=5 // pred_region
        %s236 = ssub.s32 %s17, 1
        %s237 = sand.u32 %s44, 1
        %s238 = scalar_lea.sflag [#allocation3], %s237
        %s239 = sand.u32 %s44, 1
        %s240 = smul.addr %s239, 64
        %s241 = scalar_lea.vmem [#allocation2], %s240
        // Predicated region
        $region37: #{tpu_custom_call.1} parent=35 // pred_check
          %p242 = pneg %p57
        $region38: #{tpu_custom_call.1} parent=35 // pred_check_branch
          %244 = sbr.rel (%p242) target = $region40
        $region39: #{tpu_custom_call.1} parent=35 // pred_region
          %245 = dma.done %s238, 1024
        $region40: #{tpu_custom_call.1} parent=35 // pred_fallthru
          _
        // Predicated region
        $region41: #{tpu_custom_call.1} parent=35 // pred_check
          %p246 = pneg %p78
        $region42: #{tpu_custom_call.1} parent=35 // pred_check_branch
          %248 = sbr.rel (%p246) target = $region44
        $region43: #{tpu_custom_call.1} parent=35 // pred_region
          %249 = dma.done [#allocation6], 2048
        $region44: #{tpu_custom_call.1} parent=35 // pred_fallthru
          _
        %s250 = sand.u32 %s44, 1
        %s251 = scalar_lea.sflag [#allocation3], %s250
        %s252 = sand.u32 %s44, 1
        %s253 = smul.addr %s252, 64
        %s254 = scalar_lea.vmem [#allocation2], %s253
        %p255 = pneg %p57
        %p256 = pneg %p54
        %p257 = pneg %p78
        %p258 = pneg %p75
        %s259 = smul.u32 16, %s26
        %p260 = scmp.lt.s32.totalorder %s259, 31
        %s261 = scalar_select %p260, %s259, 31
        %s262 = smul.addr %s261, 8
        %s263 = scalar_lea.vmem %s2, %s262
        %p264 = pneg %p104
        %p265 = pneg %p101
        %s266 = smul.u32 16, %s26
        %p267 = scmp.lt.s32.totalorder %s266, 31
        %s268 = scalar_select %p267, %s266, 31
        %s269 = smul.addr %s268, 8
        %s270 = scalar_lea.vmem %s3, %s269
        %p271 = pneg %p130
        %p272 = pneg %p127
        %p273 = pneg %p156
        %p274 = pneg %p153
        %s275 = sand.u32 %s143, 1
        %s276 = scalar_lea.sflag [#allocation4], %s275
        %s277 = sand.u32 %s143, 1
        %s278 = smul.addr %s277, 128
        %s279 = scalar_lea.vmem [#allocation7], %s278
        %s280 = smul.u32 4, %s26
        %s281 = smul.u32 2, %s27
        %s282 = smul.u32 16, %s26
        %p283 = scmp.lt.s32.totalorder %s282, 31
        %s284 = scalar_select %p283, %s282, 31
        %s285 = smul.addr %s284, 8
        %s286 = scalar_lea.vmem %s2, %s285
        %s287 = smul.u32 16, %s26
        %s288 = smul.u32 16, %s26
        %p289 = scmp.lt.s32.totalorder %s288, 31
        %s290 = scalar_select %p289, %s288, 31
        %s291 = smul.addr %s290, 8
        %s292 = scalar_lea.vmem %s3, %s291
        %s293 = smul.u32 16, %s26
        %s294 = smul.u32 16, %s26
        %p296 = scmp.eq.s32.totalorder %s27, 0
        // Predicated region
        $region45: #{tpu_custom_call.1} parent=35 // pred_check
          %p297 = pneg %p296
        $region46: #{tpu_custom_call.1} parent=35 // pred_check_branch
          %299 = sbr.rel (%p297) target = $region48
        $region47: #{tpu_custom_call.1} parent=35 // pred_region
          %300 = vst [vmem:[%s279] sm:$0xff] 0.0
          %301 = vst [vmem:[%s279 + $0x8] sm:$0xff] 0.0
          %302 = vst [vmem:[%s279 + $0x10] sm:$0xff] 0.0
          %303 = vst [vmem:[%s279 + $0x18] sm:$0xff] 0.0
          %304 = vst [vmem:[%s279 + $0x20] sm:$0xff] 0.0
          %305 = vst [vmem:[%s279 + $0x28] sm:$0xff] 0.0
          %306 = vst [vmem:[%s279 + $0x30] sm:$0xff] 0.0
          %307 = vst [vmem:[%s279 + $0x38] sm:$0xff] 0.0
          %308 = vst [vmem:[%s279 + $0x40] sm:$0xff] 0.0
          %309 = vst [vmem:[%s279 + $0x48] sm:$0xff] 0.0
          %310 = vst [vmem:[%s279 + $0x50] sm:$0xff] 0.0
          %311 = vst [vmem:[%s279 + $0x58] sm:$0xff] 0.0
          %312 = vst [vmem:[%s279 + $0x60] sm:$0xff] 0.0
          %313 = vst [vmem:[%s279 + $0x68] sm:$0xff] 0.0
          %314 = vst [vmem:[%s279 + $0x70] sm:$0xff] 0.0
          %315 = vst [vmem:[%s279 + $0x78] sm:$0xff] 0.0
        $region48: #{tpu_custom_call.1} parent=35 // pred_fallthru
          _
        %v316 = vld [vmem:[%s241] sm:$0xff]
        %v317 = vld [vmem:[%s241 + $0x8] sm:$0xff]
        %v318 = vld [vmem:[%s241 + $0x10] sm:$0xff]
        %v319 = vld [vmem:[%s241 + $0x18] sm:$0xff]
        %v320 = vld [vmem:[%s241 + $0x20] sm:$0xff]
        %v321 = vld [vmem:[%s241 + $0x28] sm:$0xff]
        %v322 = vld [vmem:[%s241 + $0x30] sm:$0xff]
        %v323 = vld [vmem:[%s241 + $0x38] sm:$0xff]
        %v324 = vunpack.c.l.s8.bf16 %v316
        %v325 = vunpack.c.l.s8.bf16 %v317
        %v326 = vunpack.c.h.s8.bf16 %v316
        %v327 = vunpack.c.h.s8.bf16 %v317
        %v328 = vunpack.c.l.s8.bf16 %v318
        %v329 = vunpack.c.l.s8.bf16 %v319
        %v330 = vunpack.c.h.s8.bf16 %v318
        %v331 = vunpack.c.h.s8.bf16 %v319
        %v332 = vunpack.c.l.s8.bf16 %v320
        %v333 = vunpack.c.l.s8.bf16 %v321
        %v334 = vunpack.c.h.s8.bf16 %v320
        %v335 = vunpack.c.h.s8.bf16 %v321
        %v336 = vunpack.c.l.s8.bf16 %v322
        %v337 = vunpack.c.l.s8.bf16 %v323
        %v338 = vunpack.c.h.s8.bf16 %v322
        %v339 = vunpack.c.h.s8.bf16 %v323
        %s340 = smul.u32 %s27, 256
        %s341 = sshra.s32 %s340, 3
        %s342 = sand.u32 %s340, 7
        %s343 = smul.addr %s341, 4
        %s344 = scalar_lea.vmem [#allocation5], %s343
        %v345 = vld [vmem:[%s344] sm:$0xf]
        %v346 = vld [vmem:[%s344 + $0x4] sm:$0xf]
        %v347 = vld [vmem:[%s344 + $0x8] sm:$0xf]
        %v348 = vld [vmem:[%s344 + $0xc] sm:$0xf]
        %v349 = vld [vmem:[%s344 + $0x10] sm:$0xf]
        %v350 = vld [vmem:[%s344 + $0x14] sm:$0xf]
        %v351 = vld [vmem:[%s344 + $0x18] sm:$0xf]
        %v352 = vld [vmem:[%s344 + $0x1c] sm:$0xf]
        %v353 = vld [vmem:[%s344 + $0x20] sm:$0xf]
        %v354 = vld [vmem:[%s344 + $0x24] sm:$0xf]
        %v355 = vld [vmem:[%s344 + $0x28] sm:$0xf]
        %v356 = vld [vmem:[%s344 + $0x2c] sm:$0xf]
        %v357 = vld [vmem:[%s344 + $0x30] sm:$0xf]
        %v358 = vld [vmem:[%s344 + $0x34] sm:$0xf]
        %v359 = vld [vmem:[%s344 + $0x38] sm:$0xf]
        %v360 = vld [vmem:[%s344 + $0x3c] sm:$0xf]
        %v361 = vld [vmem:[%s344 + $0x40] sm:$0xf]
        %v362 = vld [vmem:[%s344 + $0x44] sm:$0xf]
        %v363 = vld [vmem:[%s344 + $0x48] sm:$0xf]
        %v364 = vld [vmem:[%s344 + $0x4c] sm:$0xf]
        %v365 = vld [vmem:[%s344 + $0x50] sm:$0xf]
        %v366 = vld [vmem:[%s344 + $0x54] sm:$0xf]
        %v367 = vld [vmem:[%s344 + $0x58] sm:$0xf]
        %v368 = vld [vmem:[%s344 + $0x5c] sm:$0xf]
        %v369 = vld [vmem:[%s344 + $0x60] sm:$0xf]
        %v370 = vld [vmem:[%s344 + $0x64] sm:$0xf]
        %v371 = vld [vmem:[%s344 + $0x68] sm:$0xf]
        %v372 = vld [vmem:[%s344 + $0x6c] sm:$0xf]
        %v373 = vld [vmem:[%s344 + $0x70] sm:$0xf]
        %v374 = vld [vmem:[%s344 + $0x74] sm:$0xf]
        %v375 = vld [vmem:[%s344 + $0x78] sm:$0xf]
        %v376 = vld [vmem:[%s344 + $0x7c] sm:$0xf]
        %v377 = vld [vmem:[%s279] sm:$0xff]
        %v378 = vld [vmem:[%s279 + $0x8] sm:$0xff]
        %v379 = vld [vmem:[%s279 + $0x10] sm:$0xff]
        %v380 = vld [vmem:[%s279 + $0x18] sm:$0xff]
        %v381 = vld [vmem:[%s279 + $0x20] sm:$0xff]
        %v382 = vld [vmem:[%s279 + $0x28] sm:$0xff]
        %v383 = vld [vmem:[%s279 + $0x30] sm:$0xff]
        %v384 = vld [vmem:[%s279 + $0x38] sm:$0xff]
        %v385 = vld [vmem:[%s279 + $0x40] sm:$0xff]
        %v386 = vld [vmem:[%s279 + $0x48] sm:$0xff]
        %v387 = vld [vmem:[%s279 + $0x50] sm:$0xff]
        %v388 = vld [vmem:[%s279 + $0x58] sm:$0xff]
        %v389 = vld [vmem:[%s279 + $0x60] sm:$0xff]
        %v390 = vld [vmem:[%s279 + $0x68] sm:$0xff]
        %v391 = vld [vmem:[%s279 + $0x70] sm:$0xff]
        %v392 = vld [vmem:[%s279 + $0x78] sm:$0xff]
        %v425 = vunpack.c.l.b16 %v345
        %v426 = vunpack.c.l.b16 %v346
        %v427 = vunpack.c.l.b16 %v347
        %v428 = vunpack.c.l.b16 %v348
        %v429 = vunpack.c.l.b16 %v349
        %v430 = vunpack.c.l.b16 %v350
        %v431 = vunpack.c.l.b16 %v351
        %v432 = vunpack.c.l.b16 %v352
        %v433 = vunpack.c.l.b16 %v353
        %v434 = vunpack.c.l.b16 %v354
        %v435 = vunpack.c.l.b16 %v355
        %v436 = vunpack.c.l.b16 %v356
        %v437 = vunpack.c.l.b16 %v357
        %v438 = vunpack.c.l.b16 %v358
        %v439 = vunpack.c.l.b16 %v359
        %v440 = vunpack.c.l.b16 %v360
        %v441 = vunpack.c.l.b16 %v361
        %v442 = vunpack.c.l.b16 %v362
        %v443 = vunpack.c.l.b16 %v363
        %v444 = vunpack.c.l.b16 %v364
        %v445 = vunpack.c.l.b16 %v365
        %v446 = vunpack.c.l.b16 %v366
        %v447 = vunpack.c.l.b16 %v367
        %v448 = vunpack.c.l.b16 %v368
        %v449 = vunpack.c.l.b16 %v369
        %v450 = vunpack.c.l.b16 %v370
        %v451 = vunpack.c.l.b16 %v371
        %v452 = vunpack.c.l.b16 %v372
        %v453 = vunpack.c.l.b16 %v373
        %v454 = vunpack.c.l.b16 %v374
        %v455 = vunpack.c.l.b16 %v375
        %v456 = vunpack.c.l.b16 %v376
        %v457 = vpack.c.b16 %v426, %v425
        %v458 = vpack.c.b16 %v428, %v427
        %v459 = vpack.c.b16 %v430, %v429
        %v460 = vpack.c.b16 %v432, %v431
        %v461 = vpack.c.b16 %v434, %v433
        %v462 = vpack.c.b16 %v436, %v435
        %v463 = vpack.c.b16 %v438, %v437
        %v464 = vpack.c.b16 %v440, %v439
        %v465 = vpack.c.b16 %v442, %v441
        %v466 = vpack.c.b16 %v444, %v443
        %v467 = vpack.c.b16 %v446, %v445
        %v468 = vpack.c.b16 %v448, %v447
        %v469 = vpack.c.b16 %v450, %v449
        %v470 = vpack.c.b16 %v452, %v451
        %v471 = vpack.c.b16 %v454, %v453
        %v472 = vpack.c.b16 %v456, %v455
        %489 = vmatprep.subr.bf16.mxu0 0
        %490 = vmatpush1.bf16.msra.mxu0 %v457
        %491 = vmatprep.subr.bf16.mxu0 0
        %492 = vmatpush1.bf16.msra.mxu0 %v458
        %493 = vmatprep.subr.bf16.mxu0 0
        %494 = vmatpush1.bf16.msra.mxu0 %v459
        %495 = vmatprep.subr.bf16.mxu0 0
        %496 = vmatpush1.bf16.msra.mxu0 %v460
        %497 = vmatprep.subr.bf16.mxu0 0
        %498 = vmatpush1.bf16.msra.mxu0 %v461
        %499 = vmatprep.subr.bf16.mxu0 0
        %500 = vmatpush1.bf16.msra.mxu0 %v462
        %501 = vmatprep.subr.bf16.mxu0 0
        %502 = vmatpush1.bf16.msra.mxu0 %v463
        %503 = vmatprep.subr.bf16.mxu0 0
        %504 = vmatpush1.bf16.msra.mxu0 %v464
        %505 = vmatprep.subr.bf16.mxu0 0
        %506 = vmatpush1.bf16.msra.mxu0 %v465
        %507 = vmatprep.subr.bf16.mxu0 0
        %508 = vmatpush1.bf16.msra.mxu0 %v466
        %509 = vmatprep.subr.bf16.mxu0 0
        %510 = vmatpush1.bf16.msra.mxu0 %v467
        %511 = vmatprep.subr.bf16.mxu0 0
        %512 = vmatpush1.bf16.msra.mxu0 %v468
        %513 = vmatprep.subr.bf16.mxu0 0
        %514 = vmatpush1.bf16.msra.mxu0 %v469
        %515 = vmatprep.subr.bf16.mxu0 0
        %516 = vmatpush1.bf16.msra.mxu0 %v470
        %517 = vmatprep.subr.bf16.mxu0 0
        %518 = vmatpush1.bf16.msra.mxu0 %v471
        %519 = vmatprep.subr.bf16.mxu0 0
        %520 = vmatpush1.bf16.msra.mxu0 %v472
        %521 = vmatprep.mubr.bf16.mxu0 %v325
        %522 = vmatmul.mubr.bf16.gmra.mrb[0].mxu0 %v324
        %v523 = vpop.f32.mrb[0].mxu0
        %v524 = vadd.f32 0.0, %v523
        %v525 = vpop.f32.mrb[0].mxu0
        %v526 = vpop.f32.mrb[0].mxu0
        %v527 = vadd.f32 0.0, %v526
        %v528 = vpop.f32.mrb[0].mxu0
        %529 = vmatprep.mubr.bf16.mxu0 %v327
        %530 = vmatmul.mubr.bf16.gmra.mrb[0].mxu0 %v326
        %v531 = vpop.f32.mrb[0].mxu0
        %v532 = vadd.f32 0.0, %v531
        %v533 = vpop.f32.mrb[0].mxu0
        %v534 = vpop.f32.mrb[0].mxu0
        %v535 = vadd.f32 0.0, %v534
        %v536 = vpop.f32.mrb[0].mxu0
        %537 = vmatprep.mubr.bf16.mxu0 %v329
        %538 = vmatmul.mubr.bf16.gmra.mrb[0].mxu0 %v328
        %v539 = vpop.f32.mrb[0].mxu0
        %v540 = vadd.f32 0.0, %v539
        %v541 = vpop.f32.mrb[0].mxu0
        %v542 = vpop.f32.mrb[0].mxu0
        %v543 = vadd.f32 0.0, %v542
        %v544 = vpop.f32.mrb[0].mxu0
        %545 = vmatprep.mubr.bf16.mxu0 %v331
        %546 = vmatmul.mubr.bf16.gmra.mrb[0].mxu0 %v330
        %v547 = vpop.f32.mrb[0].mxu0
        %v548 = vadd.f32 0.0, %v547
        %v549 = vpop.f32.mrb[0].mxu0
        %v550 = vpop.f32.mrb[0].mxu0
        %v551 = vadd.f32 0.0, %v550
        %v552 = vpop.f32.mrb[0].mxu0
        %553 = vmatprep.mubr.bf16.mxu0 %v333
        %554 = vmatmul.mubr.bf16.gmra.mrb[0].mxu0 %v332
        %v555 = vpop.f32.mrb[0].mxu0
        %v556 = vadd.f32 0.0, %v555
        %v557 = vpop.f32.mrb[0].mxu0
        %v558 = vpop.f32.mrb[0].mxu0
        %v559 = vadd.f32 0.0, %v558
        %v560 = vpop.f32.mrb[0].mxu0
        %561 = vmatprep.mubr.bf16.mxu0 %v335
        %562 = vmatmul.mubr.bf16.gmra.mrb[0].mxu0 %v334
        %v563 = vpop.f32.mrb[0].mxu0
        %v564 = vadd.f32 0.0, %v563
        %v565 = vpop.f32.mrb[0].mxu0
        %v566 = vpop.f32.mrb[0].mxu0
        %v567 = vadd.f32 0.0, %v566
        %v568 = vpop.f32.mrb[0].mxu0
        %569 = vmatprep.mubr.bf16.mxu0 %v337
        %570 = vmatmul.mubr.bf16.gmra.mrb[0].mxu0 %v336
        %v571 = vpop.f32.mrb[0].mxu0
        %v572 = vadd.f32 0.0, %v571
        %v573 = vpop.f32.mrb[0].mxu0
        %v574 = vpop.f32.mrb[0].mxu0
        %v575 = vadd.f32 0.0, %v574
        %v576 = vpop.f32.mrb[0].mxu0
        %577 = vmatprep.mubr.bf16.mxu0 %v339
        %578 = vmatmul.mubr.bf16.gmra.mrb[0].mxu0 %v338
        %v579 = vpop.f32.mrb[0].mxu0
        %v580 = vadd.f32 0.0, %v579
        %v581 = vpop.f32.mrb[0].mxu0
        %v582 = vpop.f32.mrb[0].mxu0
        %v583 = vadd.f32 0.0, %v582
        %v584 = vpop.f32.mrb[0].mxu0
        %585 = vdwg.mxu0
        %v586 = vadd.f32 %v377, %v524
        %v587 = vadd.f32 %v378, %v527
        %v588 = vadd.f32 %v379, %v532
        %v589 = vadd.f32 %v380, %v535
        %v590 = vadd.f32 %v381, %v540
        %v591 = vadd.f32 %v382, %v543
        %v592 = vadd.f32 %v383, %v548
        %v593 = vadd.f32 %v384, %v551
        %v594 = vadd.f32 %v385, %v556
        %v595 = vadd.f32 %v386, %v559
        %v596 = vadd.f32 %v387, %v564
        %v597 = vadd.f32 %v388, %v567
        %v598 = vadd.f32 %v389, %v572
        %v599 = vadd.f32 %v390, %v575
        %v600 = vadd.f32 %v391, %v580
        %v601 = vadd.f32 %v392, %v583
        %602 = vst [vmem:[%s279] sm:$0xff] %v586
        %603 = vst [vmem:[%s279 + $0x8] sm:$0xff] %v587
        %604 = vst [vmem:[%s279 + $0x10] sm:$0xff] %v588
        %605 = vst [vmem:[%s279 + $0x18] sm:$0xff] %v589
        %606 = vst [vmem:[%s279 + $0x20] sm:$0xff] %v590
        %607 = vst [vmem:[%s279 + $0x28] sm:$0xff] %v591
        %608 = vst [vmem:[%s279 + $0x30] sm:$0xff] %v592
        %609 = vst [vmem:[%s279 + $0x38] sm:$0xff] %v593
        %610 = vst [vmem:[%s279 + $0x40] sm:$0xff] %v594
        %611 = vst [vmem:[%s279 + $0x48] sm:$0xff] %v595
        %612 = vst [vmem:[%s279 + $0x50] sm:$0xff] %v596
        %613 = vst [vmem:[%s279 + $0x58] sm:$0xff] %v597
        %614 = vst [vmem:[%s279 + $0x60] sm:$0xff] %v598
        %615 = vst [vmem:[%s279 + $0x68] sm:$0xff] %v599
        %616 = vst [vmem:[%s279 + $0x70] sm:$0xff] %v600
        %617 = vst [vmem:[%s279 + $0x78] sm:$0xff] %v601
        // Predicated region
        $region49: #{tpu_custom_call.1} parent=35 // pred_check
          %p618 = pneg %p296
        $region50: #{tpu_custom_call.1} parent=35 // pred_check_branch
          %620 = sbr.rel (%p618) target = $region52
        $region51: #{tpu_custom_call.1} parent=35 // pred_region
          %v621 = vld [vmem:[%s292] sm:$0xff]
          %v622 = vld [vmem:[%s292 + $0x8] sm:$0xff]
          %v623 = vld [vmem:[%s292 + $0x10] sm:$0xff]
          %v624 = vld [vmem:[%s292 + $0x18] sm:$0xff]
          %v625 = vld [vmem:[%s292 + $0x20] sm:$0xff]
          %v626 = vld [vmem:[%s292 + $0x28] sm:$0xff]
          %v627 = vld [vmem:[%s292 + $0x30] sm:$0xff]
          %v628 = vld [vmem:[%s292 + $0x38] sm:$0xff]
          %v629 = vld [vmem:[%s292 + $0x40] sm:$0xff]
          %v630 = vld [vmem:[%s292 + $0x48] sm:$0xff]
          %v631 = vld [vmem:[%s292 + $0x50] sm:$0xff]
          %v632 = vld [vmem:[%s292 + $0x58] sm:$0xff]
          %v633 = vld [vmem:[%s292 + $0x60] sm:$0xff]
          %v634 = vld [vmem:[%s292 + $0x68] sm:$0xff]
          %v635 = vld [vmem:[%s292 + $0x70] sm:$0xff]
          %v636 = vld [vmem:[%s292 + $0x78] sm:$0xff]
          %v637 = vld [vmem:[%s279] sm:$0xff]
          %v638 = vld [vmem:[%s279 + $0x8] sm:$0xff]
          %v639 = vld [vmem:[%s279 + $0x10] sm:$0xff]
          %v640 = vld [vmem:[%s279 + $0x18] sm:$0xff]
          %v641 = vld [vmem:[%s279 + $0x20] sm:$0xff]
          %v642 = vld [vmem:[%s279 + $0x28] sm:$0xff]
          %v643 = vld [vmem:[%s279 + $0x30] sm:$0xff]
          %v644 = vld [vmem:[%s279 + $0x38] sm:$0xff]
          %v645 = vld [vmem:[%s279 + $0x40] sm:$0xff]
          %v646 = vld [vmem:[%s279 + $0x48] sm:$0xff]
          %v647 = vld [vmem:[%s279 + $0x50] sm:$0xff]
          %v648 = vld [vmem:[%s279 + $0x58] sm:$0xff]
          %v649 = vld [vmem:[%s279 + $0x60] sm:$0xff]
          %v650 = vld [vmem:[%s279 + $0x68] sm:$0xff]
          %v651 = vld [vmem:[%s279 + $0x70] sm:$0xff]
          %v652 = vld [vmem:[%s279 + $0x78] sm:$0xff]
          %654 = vset.pattern.permute.xlu0 0
          %655 = vperm.xlu0 %654, %v621
          %v656 = vpop.permute.xlu0 %655
          %659 = vset.pattern.permute.xlu0 0
          %660 = vperm.xlu0 %659, %v622
          %v661 = vpop.permute.xlu0 %660
          %664 = vset.pattern.permute.xlu0 0
          %665 = vperm.xlu0 %664, %v623
          %v666 = vpop.permute.xlu0 %665
          %669 = vset.pattern.permute.xlu0 0
          %670 = vperm.xlu0 %669, %v624
          %v671 = vpop.permute.xlu0 %670
          %674 = vset.pattern.permute.xlu0 0
          %675 = vperm.xlu0 %674, %v625
          %v676 = vpop.permute.xlu0 %675
          %679 = vset.pattern.permute.xlu0 0
          %680 = vperm.xlu0 %679, %v626
          %v681 = vpop.permute.xlu0 %680
          %684 = vset.pattern.permute.xlu0 0
          %685 = vperm.xlu0 %684, %v627
          %v686 = vpop.permute.xlu0 %685
          %689 = vset.pattern.permute.xlu0 0
          %690 = vperm.xlu0 %689, %v628
          %v691 = vpop.permute.xlu0 %690
          %694 = vset.pattern.permute.xlu0 0
          %695 = vperm.xlu0 %694, %v629
          %v696 = vpop.permute.xlu0 %695
          %699 = vset.pattern.permute.xlu0 0
          %700 = vperm.xlu0 %699, %v630
          %v701 = vpop.permute.xlu0 %700
          %704 = vset.pattern.permute.xlu0 0
          %705 = vperm.xlu0 %704, %v631
          %v706 = vpop.permute.xlu0 %705
          %709 = vset.pattern.permute.xlu0 0
          %710 = vperm.xlu0 %709, %v632
          %v711 = vpop.permute.xlu0 %710
          %714 = vset.pattern.permute.xlu0 0
          %715 = vperm.xlu0 %714, %v633
          %v716 = vpop.permute.xlu0 %715
          %719 = vset.pattern.permute.xlu0 0
          %720 = vperm.xlu0 %719, %v634
          %v721 = vpop.permute.xlu0 %720
          %724 = vset.pattern.permute.xlu0 0
          %725 = vperm.xlu0 %724, %v635
          %v726 = vpop.permute.xlu0 %725
          %729 = vset.pattern.permute.xlu0 0
          %730 = vperm.xlu0 %729, %v636
          %v731 = vpop.permute.xlu0 %730
          %v733 = vmul.f32 %v656, %v637
          %v734 = vmul.f32 %v661, %v638
          %v735 = vmul.f32 %v666, %v639
          %v736 = vmul.f32 %v671, %v640
          %v737 = vmul.f32 %v676, %v641
          %v738 = vmul.f32 %v681, %v642
          %v739 = vmul.f32 %v686, %v643
          %v740 = vmul.f32 %v691, %v644
          %v741 = vmul.f32 %v696, %v645
          %v742 = vmul.f32 %v701, %v646
          %v743 = vmul.f32 %v706, %v647
          %v744 = vmul.f32 %v711, %v648
          %v745 = vmul.f32 %v716, %v649
          %v746 = vmul.f32 %v721, %v650
          %v747 = vmul.f32 %v726, %v651
          %v748 = vmul.f32 %v731, %v652
          %v749 = vld [vmem:[%s286] sm:$0xff]
          %v750 = vld [vmem:[%s286 + $0x8] sm:$0xff]
          %v751 = vld [vmem:[%s286 + $0x10] sm:$0xff]
          %v752 = vld [vmem:[%s286 + $0x18] sm:$0xff]
          %v753 = vld [vmem:[%s286 + $0x20] sm:$0xff]
          %v754 = vld [vmem:[%s286 + $0x28] sm:$0xff]
          %v755 = vld [vmem:[%s286 + $0x30] sm:$0xff]
          %v756 = vld [vmem:[%s286 + $0x38] sm:$0xff]
          %v757 = vld [vmem:[%s286 + $0x40] sm:$0xff]
          %v758 = vld [vmem:[%s286 + $0x48] sm:$0xff]
          %v759 = vld [vmem:[%s286 + $0x50] sm:$0xff]
          %v760 = vld [vmem:[%s286 + $0x58] sm:$0xff]
          %v761 = vld [vmem:[%s286 + $0x60] sm:$0xff]
          %v762 = vld [vmem:[%s286 + $0x68] sm:$0xff]
          %v763 = vld [vmem:[%s286 + $0x70] sm:$0xff]
          %v764 = vld [vmem:[%s286 + $0x78] sm:$0xff]
          %v765 = vadd.f32 %v733, %v749
          %v766 = vadd.f32 %v734, %v750
          %v767 = vadd.f32 %v735, %v751
          %v768 = vadd.f32 %v736, %v752
          %v769 = vadd.f32 %v737, %v753
          %v770 = vadd.f32 %v738, %v754
          %v771 = vadd.f32 %v739, %v755
          %v772 = vadd.f32 %v740, %v756
          %v773 = vadd.f32 %v741, %v757
          %v774 = vadd.f32 %v742, %v758
          %v775 = vadd.f32 %v743, %v759
          %v776 = vadd.f32 %v744, %v760
          %v777 = vadd.f32 %v745, %v761
          %v778 = vadd.f32 %v746, %v762
          %v779 = vadd.f32 %v747, %v763
          %v780 = vadd.f32 %v748, %v764
          %v781 = vmax.f32 %v765, 0.0
          %v782 = vmax.f32 %v766, 0.0
          %v783 = vmax.f32 %v767, 0.0
          %v784 = vmax.f32 %v768, 0.0
          %v785 = vmax.f32 %v769, 0.0
          %v786 = vmax.f32 %v770, 0.0
          %v787 = vmax.f32 %v771, 0.0
          %v788 = vmax.f32 %v772, 0.0
          %v789 = vmax.f32 %v773, 0.0
          %v790 = vmax.f32 %v774, 0.0
          %v791 = vmax.f32 %v775, 0.0
          %v792 = vmax.f32 %v776, 0.0
          %v793 = vmax.f32 %v777, 0.0
          %v794 = vmax.f32 %v778, 0.0
          %v795 = vmax.f32 %v779, 0.0
          %v796 = vmax.f32 %v780, 0.0
          %797 = vst [vmem:[%s279] sm:$0xff] %v781
          %798 = vst [vmem:[%s279 + $0x8] sm:$0xff] %v782
          %799 = vst [vmem:[%s279 + $0x10] sm:$0xff] %v783
          %800 = vst [vmem:[%s279 + $0x18] sm:$0xff] %v784
          %801 = vst [vmem:[%s279 + $0x20] sm:$0xff] %v785
          %802 = vst [vmem:[%s279 + $0x28] sm:$0xff] %v786
          %803 = vst [vmem:[%s279 + $0x30] sm:$0xff] %v787
          %804 = vst [vmem:[%s279 + $0x38] sm:$0xff] %v788
          %805 = vst [vmem:[%s279 + $0x40] sm:$0xff] %v789
          %806 = vst [vmem:[%s279 + $0x48] sm:$0xff] %v790
          %807 = vst [vmem:[%s279 + $0x50] sm:$0xff] %v791
          %808 = vst [vmem:[%s279 + $0x58] sm:$0xff] %v792
          %809 = vst [vmem:[%s279 + $0x60] sm:$0xff] %v793
          %810 = vst [vmem:[%s279 + $0x68] sm:$0xff] %v794
          %811 = vst [vmem:[%s279 + $0x70] sm:$0xff] %v795
          %812 = vst [vmem:[%s279 + $0x78] sm:$0xff] %v796
        $region52: #{tpu_custom_call.1} parent=35 // pred_fallthru
          _
        %s813 = sand.u32 %s143, 1
        %s814 = scalar_lea.sflag [#allocation4], %s813
        %s815 = sand.u32 %s143, 1
        %s816 = smul.addr %s815, 128
        %s817 = scalar_lea.vmem [#allocation7], %s816
        // Predicated region
        $region53: #{tpu_custom_call.1} parent=35 // pred_check
          %p818 = pneg %p153
        $region54: #{tpu_custom_call.1} parent=35 // pred_check_branch
          %820 = sbr.rel (%p818) target = $region56
        $region55: #{tpu_custom_call.1} parent=35 // pred_region
          %s821 = smul.u32 16, %s26
          %s823 = ssub.s32 2048, 2048
          %824 = vsyncadd %s814, %s823
          %s825 = smul.addr %s821, 128
          %s826 = scalar_lea.hbm %s4, %s825
          %s827 = sshll.u32 %s817, 4
          %s828 = int_to_ptr.vmem [resolvable:$true] %s827
          %833 = dma.vmem_to_hbm [thread:$0]  %s828, 2048, %s826, %s814, 128, 128, 8
        $region56: #{tpu_custom_call.1} parent=35 // pred_fallthru
          _
      $region36: #{tpu_custom_call.1} parent=5 // pred_fallthru
        _
      %p834 = scmp.le.s32.totalorder 2, %s17
      // Predicated region
      $region57: #{tpu_custom_call.1} parent=5 // pred_check
        %p835 = pneg %p834
      $region58: #{tpu_custom_call.1} parent=5 // pred_check_branch
        %837 = sbr.rel (%p835) target = $region60
      $region59: #{tpu_custom_call.1} parent=5 // pred_region
        %s838 = ssub.s32 %s17, 2
        // Predicated region
        $region61: #{tpu_custom_call.1} parent=59 // pred_check
          %p839 = pneg %p159
        $region62: #{tpu_custom_call.1} parent=59 // pred_check_branch
          %841 = sbr.rel (%p839) target = $region64
        $region63: #{tpu_custom_call.1} parent=59 // pred_region
          %s842 = sand.u32 %s144, 1
          %s843 = scalar_lea.sflag [#allocation4], %s842
          %s844 = sand.u32 %s144, 1
          %s845 = smul.addr %s844, 128
          %s846 = scalar_lea.vmem [#allocation7], %s845
          %847 = dma.done %s843, 2048
        $region64: #{tpu_custom_call.1} parent=59 // pred_fallthru
          _
      $region60: #{tpu_custom_call.1} parent=5 // pred_fallthru
        _
    $region6: #{tpu_custom_call.1} parent=1 // loop_footer
      %s21 = sadd.s32 1, %s17
    $region7: #{tpu_custom_call.1} parent=1 // loop_footer_branch
      %16 = sbr.rel target = $region3
    $region8: #{tpu_custom_call.1} parent=1 // loop_exit
      _
    %848 = vsyncpa [#allocation3], 1
    %s849 = scalar_lea.sflag [#allocation3], 1
    %850 = vsyncpa %s849, 1
    %851 = vsyncpa [#allocation6], 1
    %852 = vsyncpa [#allocation4], 1
    %s853 = scalar_lea.sflag [#allocation4], 1
    %854 = vsyncpa %s853, 1

</llo_original>
